<compile_context>
chip_gen: v5e
topology: v5e:2x2
jax: 0.10.0
libtpu: 0.0.40
codegen_flags: <defaults>
</compile_context>

<pallas_src>
import functools
import math

import jax
import jax.numpy as jnp
import numpy as np
from jax.experimental import pallas as pl
from jax.experimental.pallas import tpu as pltpu

HIDDEN = 64      # per-network hidden width (nn.Linear(..., 64))
PACKED = 256     # 3 * 64 padded up to 2 * 128 lanes
HEADW = 128      # packed head width (actor cols 0:A, value col A, cost col A+1)
OUT_W = 8        # narrow output slab: col0=value, col1=cost, col2=-0.5*maha


def _round_up(x, m):
    return ((x + m - 1) // m) * m


def _is_v5e():
    try:
        kind = jax.devices()[0].device_kind.lower()
    except Exception:
        return False
    return ("v5 lite" in kind) or ("v5e" in kind) or ("v5litepod" in kind)


# ----------------------------------------------------------------------------
# Kernel
# ----------------------------------------------------------------------------
def _safe_ac_kernel(state_ref, action_ref, inv_var_ref,
                    w1_ref, b1_ref, w2_ref, b2_ref, w3_ref, b3_ref,
                    out_ref, *, action_dim, tanh_bf16):
    f32 = jnp.float32
    bf16 = jnp.bfloat16

    def act(h):
        # hidden-layer tanh; bf16 on chips with bf16 EUP, f32 on v5e
        if tanh_bf16:
            return jnp.tanh(h.astype(bf16))
        return jnp.tanh(h).astype(bf16)

    # --- three packed, lane-dense matmuls (bf16 in, f32 MXU accumulate) ---
    x = state_ref[...].astype(bf16)                                     # (Bt, S)
    h = act(jnp.dot(x, w1_ref[...], preferred_element_type=f32)
            + b1_ref[...])                                              # (Bt, 256)
    h = act(jnp.dot(h, w2_ref[...], preferred_element_type=f32)
            + b2_ref[...])                                              # (Bt, 256)
    o = jnp.dot(h, w3_ref[...], preferred_element_type=f32) + b3_ref[...]  # (Bt, 128)

    # --- actor mean (f32 tanh for accuracy) + diagonal-MVN mahalanobis term ---
    mean = jnp.tanh(o[:, :action_dim])                                  # (Bt, A)
    diff = action_ref[...] - mean                                       # (Bt, A)
    maha = jnp.sum(diff * diff * inv_var_ref[...], axis=-1,
                   keepdims=True)                                       # (Bt, 1)

    val = o[:, action_dim:action_dim + 1]                               # (Bt, 1)
    cost = o[:, action_dim + 1:action_dim + 2]                          # (Bt, 1)

    # --- single narrow lane-dense store ---
    lane = jax.lax.broadcasted_iota(jnp.int32, out_ref.shape, 1)        # (Bt, 8)
    out_ref[...] = jnp.where(
        lane == 0, val,
        jnp.where(lane == 1, cost,
                  jnp.where(lane == 2, -0.5 * maha, 0.0)))


# ----------------------------------------------------------------------------
# Weight packing — call ONCE per parameter update (concat/pad, no scatters)
# ----------------------------------------------------------------------------
def pack_params(params, state_dim, action_dim):
    del state_dim  # inferred from the weights themselves
    f32, bf16 = jnp.float32, jnp.bfloat16
    H, A = HIDDEN, action_dim
    assert A + 2 <= HEADW, "action_dim too large for packed head width"

    (aw1, ab1), (aw2, ab2), (aw3, ab3) = params["actor"]
    (cw1, cb1), (cw2, cb2), (cw3, cb3) = params["critic"]
    (kw1, kb1), (kw2, kb2), (kw3, kb3) = params["cost_critic"]

    pad = PACKED - 3 * H

    w1 = jnp.pad(jnp.concatenate([aw1, cw1, kw1], axis=1).astype(f32),
                 ((0, 0), (0, pad)))                                    # (S, 256)
    b1 = jnp.pad(jnp.concatenate([ab1, cb1, kb1]).astype(f32),
                 (0, pad)).reshape(1, PACKED)

    zH = jnp.zeros((H, H), f32)
    w2 = jnp.concatenate([
        jnp.concatenate([aw2, zH, zH], axis=1),
        jnp.concatenate([zH, cw2, zH], axis=1),
        jnp.concatenate([zH, zH, kw2], axis=1)], axis=0).astype(f32)    # (192, 192)
    w2 = jnp.pad(w2, ((0, pad), (0, pad)))                              # (256, 256)
    b2 = jnp.pad(jnp.concatenate([ab2, cb2, kb2]).astype(f32),
                 (0, pad)).reshape(1, PACKED)

    w3 = jnp.concatenate([
        jnp.concatenate([aw3, jnp.zeros((H, 2), f32)], axis=1),
        jnp.concatenate([jnp.zeros((H, A), f32), cw3, jnp.zeros((H, 1), f32)], axis=1),
        jnp.concatenate([jnp.zeros((H, A + 1), f32), kw3], axis=1)],
        axis=0).astype(f32)                                             # (192, A+2)
    w3 = jnp.pad(w3, ((0, pad), (0, HEADW - (A + 2))))                  # (256, 128)
    b3 = jnp.pad(jnp.concatenate([ab3, cb3, kb3]).astype(f32),
                 (0, HEADW - (A + 2))).reshape(1, HEADW)

    return (w1.astype(bf16), b1, w2.astype(bf16), b2, w3.astype(bf16), b3)


# ----------------------------------------------------------------------------
# Evaluate wrapper (= SafeActorCritic.evaluate, continuous actions)
# ----------------------------------------------------------------------------
@functools.partial(jax.jit, static_argnums=(4, 5))
def _evaluate_jit(state, action, action_var, packed, block_b, tanh_bf16):
    f32 = jnp.float32
    B, S = state.shape
    A = action.shape[-1]
    w1, b1, w2, b2, w3, b3 = packed

    state = state.astype(f32)
    action = action.astype(f32)
    action_var = action_var.astype(f32)
    inv_var = (1.0 / action_var).reshape(1, A)

    # batch tile: multiple of 8; keep >= 2 grid steps when B is large enough
    # (megacore sharding on the "parallel" axis), no whole-array padding.
    blk_b = max(8, min(block_b, _round_up(pl.cdiv(B, 2), 8)))
    grid = (pl.cdiv(B, blk_b),)

    def const_spec(shape):
        return pl.BlockSpec(shape, lambda i: (0,) * len(shape),
                            pipeline_mode=pl.Buffered(1))

    kernel = functools.partial(_safe_ac_kernel, action_dim=A,
                               tanh_bf16=tanh_bf16)

    out = pl.pallas_call(
        kernel,
        out_shape=jax.ShapeDtypeStruct((B, OUT_W), f32),
        grid_spec=pltpu.PrefetchScalarGridSpec(
            num_scalar_prefetch=0,
            grid=grid,
            in_specs=[
                pl.BlockSpec((blk_b, S), lambda i: (i, 0)),    # state
                pl.BlockSpec((blk_b, A), lambda i: (i, 0)),    # action (narrow)
                const_spec((1, A)),                            # 1/var
                const_spec((S, PACKED)),                       # W1 packed
                const_spec((1, PACKED)),                       # b1
                const_spec((PACKED, PACKED)),                  # W2 block-diag
                const_spec((1, PACKED)),                       # b2
                const_spec((PACKED, HEADW)),                   # W3 head
                const_spec((1, HEADW)),                        # b3
            ],
            out_specs=pl.BlockSpec((blk_b, OUT_W), lambda i: (i, 0)),
        ),
        compiler_params=pltpu.CompilerParams(
            dimension_semantics=("parallel",),
            vmem_limit_bytes=32 * 1024 * 1024,
        ),
    )(state, action, inv_var, w1, b1, w2, b2, w3, b3)

    state_values = out[:, 0:1]
    cost_values = out[:, 1:2]

    # constant (action_var-only) pieces, hoisted out of the kernel
    k = float(A)
    log2pi = math.log(2.0 * math.pi)
    logdet = jnp.sum(jnp.log(action_var))
    action_logprobs = out[:, 2] - 0.5 * (k * log2pi + logdet)
    entropy = 0.5 * k * (1.0 + log2pi) + 0.5 * logdet
    dist_entropy = jnp.broadcast_to(entropy, (B,))

    return action_logprobs, state_values, cost_values, dist_entropy


def safe_actor_critic_evaluate(state, action, action_var, packed_params, *,
                               block_b=None, tanh_bf16=None):
    """Returns (action_logprobs[B], state_values[B,1], cost_values[B,1],
    dist_entropy[B]) matching the PyTorch evaluate() (continuous actions)."""
    v5e = _is_v5e()
    if block_b is None:
        block_b = 512 if v5e else 1024       # sweep 512-1024; v5e prefers 512
    if tanh_bf16 is None:
        tanh_bf16 = not v5e                  # v5e has no bf16 VPU/EUP path
    if action.ndim == 1:                     # action_dim == 1 reshape, as in torch
        action = action[:, None]
    return _evaluate_jit(state, action, action_var, packed_params,
                         int(block_b), bool(tanh_bf16))


# ----------------------------------------------------------------------------
# Init (PyTorch-style Linear init; weights stored as (in, out))
# ----------------------------------------------------------------------------
def _init_linear(key, fan_in, fan_out):
    kw, kb = jax.random.split(key)
    bound = 1.0 / math.sqrt(fan_in)
    w = jax.random.uniform(kw, (fan_in, fan_out), jnp.float32, -bound, bound)
    b = jax.random.uniform(kb, (fan_out,), jnp.float32, -bound, bound)
    return w, b


def init_params(key, state_dim, action_dim):
    params = {}
    dims = {
        "actor": [(state_dim, HIDDEN), (HIDDEN, HIDDEN), (HIDDEN, action_dim)],
        "critic": [(state_dim, HIDDEN), (HIDDEN, HIDDEN), (HIDDEN, 1)],
        "cost_critic": [(state_dim, HIDDEN), (HIDDEN, HIDDEN), (HIDDEN, 1)],
    }
    for net, layer_dims in dims.items():
        layers = []
        for fi, fo in layer_dims:
            key, sub = jax.random.split(key)
            layers.append(_init_linear(sub, fi, fo))
        params[net] = layers
    return params


# ----------------------------------------------------------------------------
# Pure-JAX f32 reference (mirrors the PyTorch module) for a sanity check
# ----------------------------------------------------------------------------
def _reference_evaluate(state, action, action_var, params):
    def mlp(net, x, final_tanh):
        for idx, (w, b) in enumerate(params[net]):
            x = jnp.dot(x, w) + b
            if idx < 2 or final_tanh:
                x = jnp.tanh(x)
        return x

    mean = mlp("actor", state, True)
    val = mlp("critic", state, False)
    cost = mlp("cost_critic", state, False)
    k = action.shape[-1]
    log2pi = math.log(2.0 * math.pi)
    diff = action - mean
    maha = jnp.sum(diff * diff / action_var, axis=-1)
    logdet = jnp.sum(jnp.log(action_var))
    logp = -0.5 * (maha + k * log2pi + logdet)
    ent = 0.5 * k * (1.0 + log2pi) + 0.5 * logdet
    return logp, val, cost, jnp.broadcast_to(ent, (state.shape[0],))


if __name__ == "__main__":
    # TODO(synk): act()'s dist.sample() (stochastic) and the discrete
    # Categorical branch are not implemented; only the deterministic
    # continuous-action evaluate() path is fused here.
    state_dim, action_dim, batch = 16, 4, 8
    action_std_init = 0.6

    key = jax.random.PRNGKey(0)
    kp, ks, ka = jax.random.split(key, 3)

    params = init_params(kp, state_dim, action_dim)
    action_var = jnp.full((action_dim,), action_std_init * action_std_init,
                          dtype=jnp.float32)
    state = jax.random.normal(ks, (batch, state_dim), dtype=jnp.float32)
    action = jax.random.normal(ka, (batch, action_dim), dtype=jnp.float32)

    # pack once per parameter update (amortized across all evaluate() calls)
    packed = jax.tree_util.tree_map(
        jax.block_until_ready, pack_params(params, state_dim, action_dim))

    logp, vals, costs, ent = safe_actor_critic_evaluate(
        state, action, action_var, packed)
    jax.block_until_ready((logp, vals, costs, ent))

    assert logp.shape == (batch,)
    assert vals.shape == (batch, 1)
    assert costs.shape == (batch, 1)
    assert ent.shape == (batch,)

    r_logp, r_vals, r_costs, r_ent = _reference_evaluate(
        state, action, action_var, params)
    # loose tolerances: kernel matmuls are bf16 (f32 accumulate), reference is f32
    np.testing.assert_allclose(np.asarray(logp), np.asarray(r_logp),
                               rtol=5e-2, atol=5e-1)
    np.testing.assert_allclose(np.asarray(vals), np.asarray(r_vals),
                               rtol=5e-2, atol=5e-2)
    np.testing.assert_allclose(np.asarray(costs), np.asarray(r_costs),
                               rtol=5e-2, atol=5e-2)
    np.testing.assert_allclose(np.asarray(ent), np.asarray(r_ent),
                               rtol=1e-5, atol=1e-5)
    print("KERNEL_OK")
</pallas_src>

<mosaic_0001>
module attributes {stable_mosaic.version = 11 : i64} {
  func.func @_safe_ac_kernel(%arg0: i32, %arg1: memref<8x16xf32, #tpu.memory_space<vmem>>, %arg2: memref<8x4xf32, #tpu.memory_space<vmem>>, %arg3: memref<1x4xf32, #tpu.memory_space<vmem>>, %arg4: memref<16x256xbf16, #tpu.memory_space<vmem>>, %arg5: memref<1x256xf32, #tpu.memory_space<vmem>>, %arg6: memref<256x256xbf16, #tpu.memory_space<vmem>>, %arg7: memref<1x256xf32, #tpu.memory_space<vmem>>, %arg8: memref<256x128xbf16, #tpu.memory_space<vmem>>, %arg9: memref<1x128xf32, #tpu.memory_space<vmem>>, %arg10: memref<8x8xf32, #tpu.memory_space<vmem>>) attributes {dimension_semantics = [#tpu.dimension_semantics<parallel>], iteration_bounds = array<i64: 1>, scalar_prefetch = 0 : i64, scratch_operands = 0 : i64, tpu.core_type = #tpu.core_type<tc>, window_params = [{transform_indices = @transform_0, window_bounds = array<i64: 8, 16>}, {transform_indices = @transform_1, window_bounds = array<i64: 8, 4>}, {pipeline_mode = #tpu.pipeline_mode<synchronous>, transform_indices = @transform_2, window_bounds = array<i64: 1, 4>}, {pipeline_mode = #tpu.pipeline_mode<synchronous>, transform_indices = @transform_3, window_bounds = array<i64: 16, 256>}, {pipeline_mode = #tpu.pipeline_mode<synchronous>, transform_indices = @transform_4, window_bounds = array<i64: 1, 256>}, {pipeline_mode = #tpu.pipeline_mode<synchronous>, transform_indices = @transform_5, window_bounds = array<i64: 256, 256>}, {pipeline_mode = #tpu.pipeline_mode<synchronous>, transform_indices = @transform_6, window_bounds = array<i64: 1, 256>}, {pipeline_mode = #tpu.pipeline_mode<synchronous>, transform_indices = @transform_7, window_bounds = array<i64: 256, 128>}, {pipeline_mode = #tpu.pipeline_mode<synchronous>, transform_indices = @transform_8, window_bounds = array<i64: 1, 128>}, {transform_indices = @transform_9, window_bounds = array<i64: 8, 8>}]} {
    %c0 = arith.constant 0 : index
    %c0_0 = arith.constant 0 : index
    %0 = vector.load %arg1[%c0, %c0_0] : memref<8x16xf32, #tpu.memory_space<vmem>>, vector<8x16xf32>
    %1 = arith.truncf %0 : vector<8x16xf32> to vector<8x16xbf16>
    %c0_1 = arith.constant 0 : index
    %c0_2 = arith.constant 0 : index
    %2 = vector.load %arg4[%c0_1, %c0_2] : memref<16x256xbf16, #tpu.memory_space<vmem>>, vector<16x256xbf16>
    %cst = arith.constant dense<0.000000e+00> : vector<8x256xf32>
    %3 = tpu.matmul %1, %2, %cst {dimension_numbers = #tpu.dot_dimension_numbers<[1], [0], [0], [1], [0, 0, 1, 1], [], []>} : vector<8x16xbf16>, vector<16x256xbf16>, vector<8x256xf32> -> vector<8x256xf32>
    %c0_3 = arith.constant 0 : index
    %c0_4 = arith.constant 0 : index
    %4 = vector.load %arg5[%c0_3, %c0_4] : memref<1x256xf32, #tpu.memory_space<vmem>>, vector<1x256xf32>
    %5 = vector.broadcast %4 : vector<1x256xf32> to vector<8x256xf32>
    %6 = arith.addf %3, %5 : vector<8x256xf32>
    %7 = arith.truncf %6 : vector<8x256xf32> to vector<8x256xbf16>
    %8 = math.tanh %7 : vector<8x256xbf16>
    %c0_5 = arith.constant 0 : index
    %c0_6 = arith.constant 0 : index
    %9 = vector.load %arg6[%c0_5, %c0_6] : memref<256x256xbf16, #tpu.memory_space<vmem>>, vector<256x256xbf16>
    %cst_7 = arith.constant dense<0.000000e+00> : vector<8x256xf32>
    %10 = tpu.matmul %8, %9, %cst_7 {dimension_numbers = #tpu.dot_dimension_numbers<[1], [0], [0], [1], [0, 0, 1, 1], [], []>} : vector<8x256xbf16>, vector<256x256xbf16>, vector<8x256xf32> -> vector<8x256xf32>
    %c0_8 = arith.constant 0 : index
    %c0_9 = arith.constant 0 : index
    %11 = vector.load %arg7[%c0_8, %c0_9] : memref<1x256xf32, #tpu.memory_space<vmem>>, vector<1x256xf32>
    %12 = vector.broadcast %11 : vector<1x256xf32> to vector<8x256xf32>
    %13 = arith.addf %10, %12 : vector<8x256xf32>
    %14 = arith.truncf %13 : vector<8x256xf32> to vector<8x256xbf16>
    %15 = math.tanh %14 : vector<8x256xbf16>
    %c0_10 = arith.constant 0 : index
    %c0_11 = arith.constant 0 : index
    %16 = vector.load %arg8[%c0_10, %c0_11] : memref<256x128xbf16, #tpu.memory_space<vmem>>, vector<256x128xbf16>
    %cst_12 = arith.constant dense<0.000000e+00> : vector<8x128xf32>
    %17 = tpu.matmul %15, %16, %cst_12 {dimension_numbers = #tpu.dot_dimension_numbers<[1], [0], [0], [1], [0, 0, 1, 1], [], []>} : vector<8x256xbf16>, vector<256x128xbf16>, vector<8x128xf32> -> vector<8x128xf32>
    %c0_13 = arith.constant 0 : index
    %c0_14 = arith.constant 0 : index
    %18 = vector.load %arg9[%c0_13, %c0_14] : memref<1x128xf32, #tpu.memory_space<vmem>>, vector<1x128xf32>
    %19 = vector.broadcast %18 : vector<1x128xf32> to vector<8x128xf32>
    %20 = arith.addf %17, %19 : vector<8x128xf32>
    %21 = vector.extract_strided_slice %20 {offsets = [0, 0], sizes = [8, 4], strides = [1, 1]} : vector<8x128xf32> to vector<8x4xf32>
    %22 = math.tanh %21 : vector<8x4xf32>
    %c0_15 = arith.constant 0 : index
    %c0_16 = arith.constant 0 : index
    %23 = vector.load %arg2[%c0_15, %c0_16] : memref<8x4xf32, #tpu.memory_space<vmem>>, vector<8x4xf32>
    %24 = arith.subf %23, %22 : vector<8x4xf32>
    %25 = arith.mulf %24, %24 : vector<8x4xf32>
    %c0_17 = arith.constant 0 : index
    %c0_18 = arith.constant 0 : index
    %26 = vector.load %arg3[%c0_17, %c0_18] : memref<1x4xf32, #tpu.memory_space<vmem>>, vector<1x4xf32>
    %27 = vector.broadcast %26 : vector<1x4xf32> to vector<8x4xf32>
    %28 = arith.mulf %25, %27 : vector<8x4xf32>
    %cst_19 = arith.constant dense<0.000000e+00> : vector<8xf32>
    %29 = vector.multi_reduction <add>, %28, %cst_19 [1] : vector<8x4xf32> to vector<8xf32>
    %30 = vector.shape_cast %29 : vector<8xf32> to vector<8x1xf32>
    %31 = vector.extract_strided_slice %20 {offsets = [0, 4], sizes = [8, 1], strides = [1, 1]} : vector<8x128xf32> to vector<8x1xf32>
    %32 = vector.extract_strided_slice %20 {offsets = [0, 5], sizes = [8, 1], strides = [1, 1]} : vector<8x128xf32> to vector<8x1xf32>
    %33 = tpu.iota {dimensions = array<i32: 1>} : vector<8x8xi32>
    %c0_i32 = arith.constant 0 : i32
    %34 = vector.broadcast %c0_i32 : i32 to vector<8x8xi32>
    %35 = arith.cmpi eq, %33, %34 : vector<8x8xi32>
    %c1_i32 = arith.constant 1 : i32
    %36 = vector.broadcast %c1_i32 : i32 to vector<8x8xi32>
    %37 = arith.cmpi eq, %33, %36 : vector<8x8xi32>
    %c2_i32 = arith.constant 2 : i32
    %38 = vector.broadcast %c2_i32 : i32 to vector<8x8xi32>
    %39 = arith.cmpi eq, %33, %38 : vector<8x8xi32>
    %cst_20 = arith.constant -5.000000e-01 : f32
    %40 = vector.broadcast %cst_20 : f32 to vector<8x1xf32>
    %41 = arith.mulf %40, %30 : vector<8x1xf32>
    %cst_21 = arith.constant 0.000000e+00 : f32
    %42 = vector.shape_cast %41 : vector<8x1xf32> to vector<8x1xf32>
    %43 = vector.broadcast %42 : vector<8x1xf32> to vector<8x8xf32>
    %44 = vector.broadcast %cst_21 : f32 to vector<8x8xf32>
    %45 = arith.select %39, %43, %44 : vector<8x8xi1>, vector<8x8xf32>
    %46 = vector.shape_cast %32 : vector<8x1xf32> to vector<8x1xf32>
    %47 = vector.broadcast %46 : vector<8x1xf32> to vector<8x8xf32>
    %48 = arith.select %37, %47, %45 : vector<8x8xi1>, vector<8x8xf32>
    %49 = vector.shape_cast %31 : vector<8x1xf32> to vector<8x1xf32>
    %50 = vector.broadcast %49 : vector<8x1xf32> to vector<8x8xf32>
    %51 = arith.select %35, %50, %48 : vector<8x8xi1>, vector<8x8xf32>
    %c0_22 = arith.constant 0 : index
    %c0_23 = arith.constant 0 : index
    %52 = vector.load %arg10[%c0_22, %c0_23] : memref<8x8xf32, #tpu.memory_space<vmem>>, vector<8x8xf32>
    tpu.vector_store %arg10[%c0_22, %c0_23], %51 {strides = array<i32>} : memref<8x8xf32, #tpu.memory_space<vmem>>, vector<8x8xf32>,
    return
  }
  func.func @transform_0(%arg0: i32) -> (i32, i32) {
    %c0_i32 = arith.constant 0 : i32
    %c0_i32_0 = arith.constant 0 : i32
    return %arg0, %c0_i32 : i32, i32
  }
  func.func @transform_1(%arg0: i32) -> (i32, i32) {
    %c0_i32 = arith.constant 0 : i32
    %c0_i32_0 = arith.constant 0 : i32
    return %arg0, %c0_i32 : i32, i32
  }
  func.func @transform_2(%arg0: i32) -> (i32, i32) {
    %c0_i32 = arith.constant 0 : i32
    %c0_i32_0 = arith.constant 0 : i32
    %c0_i32_1 = arith.constant 0 : i32
    return %c0_i32, %c0_i32_0 : i32, i32
  }
  func.func @transform_3(%arg0: i32) -> (i32, i32) {
    %c0_i32 = arith.constant 0 : i32
    %c0_i32_0 = arith.constant 0 : i32
    %c0_i32_1 = arith.constant 0 : i32
    return %c0_i32, %c0_i32_0 : i32, i32
  }
  func.func @transform_4(%arg0: i32) -> (i32, i32) {
    %c0_i32 = arith.constant 0 : i32
    %c0_i32_0 = arith.constant 0 : i32
    %c0_i32_1 = arith.constant 0 : i32
    return %c0_i32, %c0_i32_0 : i32, i32
  }
  func.func @transform_5(%arg0: i32) -> (i32, i32) {
    %c0_i32 = arith.constant 0 : i32
    %c0_i32_0 = arith.constant 0 : i32
    %c0_i32_1 = arith.constant 0 : i32
    return %c0_i32, %c0_i32_0 : i32, i32
  }
  func.func @transform_6(%arg0: i32) -> (i32, i32) {
    %c0_i32 = arith.constant 0 : i32
    %c0_i32_0 = arith.constant 0 : i32
    %c0_i32_1 = arith.constant 0 : i32
    return %c0_i32, %c0_i32_0 : i32, i32
  }
  func.func @transform_7(%arg0: i32) -> (i32, i32) {
    %c0_i32 = arith.constant 0 : i32
    %c0_i32_0 = arith.constant 0 : i32
    %c0_i32_1 = arith.constant 0 : i32
    return %c0_i32, %c0_i32_0 : i32, i32
  }
  func.func @transform_8(%arg0: i32) -> (i32, i32) {
    %c0_i32 = arith.constant 0 : i32
    %c0_i32_0 = arith.constant 0 : i32
    %c0_i32_1 = arith.constant 0 : i32
    return %c0_i32, %c0_i32_0 : i32, i32
  }
  func.func @transform_9(%arg0: i32) -> (i32, i32) {
    %c0_i32 = arith.constant 0 : i32
    %c0_i32_0 = arith.constant 0 : i32
    return %arg0, %c0_i32 : i32, i32
  }
}

</mosaic_0001>

<llo_original>
// kernel: _evaluate_jit.1
$region0: #{_evaluate_jit.1}
  #allocation0 [shape = 'u32[]', space=smem, size = 0x4, offset = 0x4, fixed_abs, tag = 'smem constant byte address 0x4 - core index']
  #allocation1 [shape = 'u32[72,128]{1,0:T(1,128)}', space=vmem, size = 0x9000, scoped, tag = 'internal scratch']
  %s0 = inlined_call_operand.vmem [shape: f32[8,16], index: 0, kind: input, shape index: {}]
  %s1 = inlined_call_operand.vmem [shape: f32[8,4], index: 1, kind: input, shape index: {}]
  %s2 = inlined_call_operand.vmem [shape: f32[1,4], index: 2, kind: input, shape index: {}]
  %s3 = inlined_call_operand.vmem [shape: bf16[16,256], index: 3, kind: input, shape index: {}]
  %s4 = inlined_call_operand.vmem [shape: f32[1,256], index: 4, kind: input, shape index: {}]
  %s5 = inlined_call_operand.hbm [shape: bf16[256,256], index: 5, kind: input, shape index: {}]
  %s6 = inlined_call_operand.vmem [shape: f32[1,256], index: 6, kind: input, shape index: {}]
  %s7 = inlined_call_operand.hbm [shape: bf16[256,128], index: 7, kind: input, shape index: {}]
  %s8 = inlined_call_operand.vmem [shape: f32[1,128], index: 8, kind: input, shape index: {}]
  %s9 = inlined_call_operand.vmem [shape: f32[8,8], index: 9, kind: output, shape index: {}]
  %s10 = sld [smem:[#allocation0]]
  $region54: #{_evaluate_jit.1} parent=0
    _
  %s12 = ssub.s32 1, %s10
  %s13 = scalar_select 0, %s12, %s10
  $region1: #{_evaluate_jit.1} parent=0
    #allocation2 [shape = 'u8[131072]{0}', space=vmem, size = 0x20000, scoped, tag = 'input window, operand 5, single buffered']
    #allocation3 [shape = 's32[1]{0}', space=sflag, size = 0x4, scoped, tag = 'scoped memory for _evaluate_jit.1']
    #allocation4 [shape = 'u8[65536]{0}', space=vmem, size = 0x10000, scoped, tag = 'input window, operand 7, single buffered']
    #allocation5 [shape = 's32[1]{0}', space=sflag, size = 0x4, scoped, tag = 'scoped memory for _evaluate_jit.1']
    %14 = vsyncpa [#allocation3], 0
    %15 = vsyncpa [#allocation5], 0
    // Predicated region
    $region2: #{_evaluate_jit.1} parent=1 // pred_check
      _
    $region3: #{_evaluate_jit.1} parent=1 // pred_check_branch
      %17 = sbr.rel (0) target = $region5
    $region4: #{_evaluate_jit.1} parent=1 // pred_region
      _
    $region5: #{_evaluate_jit.1} parent=1 // pred_fallthru
      _
    // Predicated region
    $region6: #{_evaluate_jit.1} parent=1 // pred_check
      _
    $region7: #{_evaluate_jit.1} parent=1 // pred_check_branch
      %19 = sbr.rel (0) target = $region9
    $region8: #{_evaluate_jit.1} parent=1 // pred_region
      _
    $region9: #{_evaluate_jit.1} parent=1 // pred_fallthru
      _
    // Predicated region
    $region10: #{_evaluate_jit.1} parent=1 // pred_check
      _
    $region11: #{_evaluate_jit.1} parent=1 // pred_check_branch
      %21 = sbr.rel (0) target = $region13
    $region12: #{_evaluate_jit.1} parent=1 // pred_region
      _
    $region13: #{_evaluate_jit.1} parent=1 // pred_fallthru
      _
    // Predicated region
    $region14: #{_evaluate_jit.1} parent=1 // pred_check
      _
    $region15: #{_evaluate_jit.1} parent=1 // pred_check_branch
      %23 = sbr.rel (0) target = $region17
    $region16: #{_evaluate_jit.1} parent=1 // pred_region
      _
    $region17: #{_evaluate_jit.1} parent=1 // pred_fallthru
      _
    // Predicated region
    $region18: #{_evaluate_jit.1} parent=1 // pred_check
      _
    $region19: #{_evaluate_jit.1} parent=1 // pred_check_branch
      %25 = sbr.rel (0) target = $region21
    $region20: #{_evaluate_jit.1} parent=1 // pred_region
      _
    $region21: #{_evaluate_jit.1} parent=1 // pred_fallthru
      _
    // Predicated region
    $region22: #{_evaluate_jit.1} parent=1 // pred_check
      _
    $region23: #{_evaluate_jit.1} parent=1 // pred_check_branch
      %27 = sbr.rel (0) target = $region25
    $region24: #{_evaluate_jit.1} parent=1 // pred_region
      %29 = vsyncadd [#allocation3], 0
      %s30 = sshll.u32 %s5, 4
      %s31 = int_to_ptr.hbm [resolvable:$true] %s30
      %s32 = sshll.u32 [#allocation2], 4
      %s33 = int_to_ptr.vmem [resolvable:$true] %s32
      %38 = dma.hbm_to_vmem [thread:$0]  %s31, 4096, %s33, [#allocation3], 128, 128, 8
    $region25: #{_evaluate_jit.1} parent=1 // pred_fallthru
      _
    // Predicated region
    $region26: #{_evaluate_jit.1} parent=1 // pred_check
      _
    $region27: #{_evaluate_jit.1} parent=1 // pred_check_branch
      %40 = sbr.rel (0) target = $region29
    $region28: #{_evaluate_jit.1} parent=1 // pred_region
      _
    $region29: #{_evaluate_jit.1} parent=1 // pred_fallthru
      _
    // Predicated region
    $region30: #{_evaluate_jit.1} parent=1 // pred_check
      _
    $region31: #{_evaluate_jit.1} parent=1 // pred_check_branch
      %42 = sbr.rel (0) target = $region33
    $region32: #{_evaluate_jit.1} parent=1 // pred_region
      %44 = vsyncadd [#allocation5], 0
      %s45 = sshll.u32 %s7, 4
      %s46 = int_to_ptr.hbm [resolvable:$true] %s45
      %s47 = sshll.u32 [#allocation4], 4
      %s48 = int_to_ptr.vmem [resolvable:$true] %s47
      %53 = dma.hbm_to_vmem [thread:$0]  %s46, 2048, %s48, [#allocation5], 64, 64, 4
    $region33: #{_evaluate_jit.1} parent=1 // pred_fallthru
      _
    // Predicated region
    $region34: #{_evaluate_jit.1} parent=1 // pred_check
      _
    $region35: #{_evaluate_jit.1} parent=1 // pred_check_branch
      %55 = sbr.rel (0) target = $region37
    $region36: #{_evaluate_jit.1} parent=1 // pred_region
      _
    $region37: #{_evaluate_jit.1} parent=1 // pred_fallthru
      _
    // Predicated region
    $region38: #{_evaluate_jit.1} parent=1 // pred_check
      _
    $region39: #{_evaluate_jit.1} parent=1 // pred_check_branch
      %57 = sbr.rel (0) target = $region41
    $region40: #{_evaluate_jit.1} parent=1 // pred_region
      %59 = dma.done [#allocation3], 4096
    $region41: #{_evaluate_jit.1} parent=1 // pred_fallthru
      _
    // Predicated region
    $region42: #{_evaluate_jit.1} parent=1 // pred_check
      _
    $region43: #{_evaluate_jit.1} parent=1 // pred_check_branch
      %61 = sbr.rel (0) target = $region45
    $region44: #{_evaluate_jit.1} parent=1 // pred_region
      %63 = dma.done [#allocation5], 2048
    $region45: #{_evaluate_jit.1} parent=1 // pred_fallthru
      _
    %v65 = vld [vmem:[%s0] sm:$0xff]
    %v66 = vpack.c.bf16 %v65, %v65
    %v67 = vld [vmem:[%s3] sm:$0xff]
    %v68 = vld [vmem:[%s3 + $0x8] sm:$0xff]
    %v69 = vld [vmem:[%s4] sm:$0x3]
    %v71 = vperm.slane %v69, 0
    %v72 = vperm.slane %v69, 1
    %v77 = vunpack.c.l.b16 %v67
    %v78 = vunpack.c.h.b16 %v67
    %v79 = vunpack.c.l.b16 %v68
    %v80 = vunpack.c.h.b16 %v68
    %v81 = vpack.c.b16 %v79, %v77
    %v82 = vpack.c.b16 %v80, %v78
    %vm85 = vcmask 130048
    %v87 = vsel %vm85, %v66, 0
    %89 = vmatpush.bf16.msra.mxu0 0
    %90 = vmatpush.bf16.msra.mxu0 0
    %91 = vmatpush.bf16.msra.mxu0 0
    %92 = vmatpush.bf16.msra.mxu0 0
    %93 = vmatpush.bf16.msra.mxu0 0
    %94 = vmatpush.bf16.msra.mxu0 0
    %95 = vmatpush.bf16.msra.mxu0 0
    %96 = vmatpush.bf16.msra.mxu0 %v81
    %97 = vmatmul.bf16.gmra.mxu0 %v87
    %v98 = vpop.f32.mrf.mxu0
    %v99 = vadd.f32 %v71, %v98
    %v100 = vpop.f32.mrf.mxu0
    %101 = vdwg.mxu0
    %102 = vmatpush.bf16.msra.mxu0 0
    %103 = vmatpush.bf16.msra.mxu0 0
    %104 = vmatpush.bf16.msra.mxu0 0
    %105 = vmatpush.bf16.msra.mxu0 0
    %106 = vmatpush.bf16.msra.mxu0 0
    %107 = vmatpush.bf16.msra.mxu0 0
    %108 = vmatpush.bf16.msra.mxu0 0
    %109 = vmatpush.bf16.msra.mxu0 %v82
    %110 = vmatmul.bf16.gmra.mxu0 %v87
    %v111 = vpop.f32.mrf.mxu0
    %v112 = vadd.f32 %v72, %v111
    %v113 = vpop.f32.mrf.mxu0
    %114 = vdwg.mxu0
    %v115 = vpack.c.bf16 %v99, %v99
    %v116 = vpack.c.bf16 %v112, %v112
    %v117 = vunpack.c.l.bf16 %v115
    %v118 = vunpack.c.l.bf16 %v116
    %v119 = vtanh.pop %v117
    %v120 = vtanh.pop %v118
    %v121 = vpack.c.bf16 %v119, %v119
    %v122 = vpack.c.bf16 %v120, %v120
    %v123 = vld [vmem:[#allocation2] sm:$0xff]
    %v124 = vld [vmem:[#allocation2 + $0x8] sm:$0xff]
    %v125 = vld [vmem:[#allocation2 + $0x10] sm:$0xff]
    %v126 = vld [vmem:[#allocation2 + $0x18] sm:$0xff]
    %v127 = vld [vmem:[#allocation2 + $0x20] sm:$0xff]
    %v128 = vld [vmem:[#allocation2 + $0x28] sm:$0xff]
    %v129 = vld [vmem:[#allocation2 + $0x30] sm:$0xff]
    %v130 = vld [vmem:[#allocation2 + $0x38] sm:$0xff]
    %v131 = vld [vmem:[#allocation2 + $0x40] sm:$0xff]
    %v132 = vld [vmem:[#allocation2 + $0x48] sm:$0xff]
    %v133 = vld [vmem:[#allocation2 + $0x50] sm:$0xff]
    %v134 = vld [vmem:[#allocation2 + $0x58] sm:$0xff]
    %v135 = vld [vmem:[#allocation2 + $0x60] sm:$0xff]
    %v136 = vld [vmem:[#allocation2 + $0x68] sm:$0xff]
    %v137 = vld [vmem:[#allocation2 + $0x70] sm:$0xff]
    %v138 = vld [vmem:[#allocation2 + $0x78] sm:$0xff]
    %v139 = vld [vmem:[#allocation2 + $0x80] sm:$0xff]
    %v140 = vld [vmem:[#allocation2 + $0x88] sm:$0xff]
    %v141 = vld [vmem:[#allocation2 + $0x90] sm:$0xff]
    %v142 = vld [vmem:[#allocation2 + $0x98] sm:$0xff]
    %v143 = vld [vmem:[#allocation2 + $0xa0] sm:$0xff]
    %v144 = vld [vmem:[#allocation2 + $0xa8] sm:$0xff]
    %v145 = vld [vmem:[#allocation2 + $0xb0] sm:$0xff]
    %v146 = vld [vmem:[#allocation2 + $0xb8] sm:$0xff]
    %v147 = vld [vmem:[#allocation2 + $0xc0] sm:$0xff]
    %v148 = vld [vmem:[#allocation2 + $0xc8] sm:$0xff]
    %v149 = vld [vmem:[#allocation2 + $0xd0] sm:$0xff]
    %v150 = vld [vmem:[#allocation2 + $0xd8] sm:$0xff]
    %v151 = vld [vmem:[#allocation2 + $0xe0] sm:$0xff]
    %v152 = vld [vmem:[#allocation2 + $0xe8] sm:$0xff]
    %v153 = vld [vmem:[#allocation2 + $0xf0] sm:$0xff]
    %v154 = vld [vmem:[#allocation2 + $0xf8] sm:$0xff]
    %v155 = vld [vmem:[%s6] sm:$0x3]
    %v157 = vperm.slane %v155, 0
    %v158 = vperm.slane %v155, 1
    %v193 = vunpack.c.l.b16 %v123
    %v194 = vunpack.c.h.b16 %v123
    %v195 = vunpack.c.l.b16 %v124
    %v196 = vunpack.c.h.b16 %v124
    %v197 = vunpack.c.l.b16 %v125
    %v198 = vunpack.c.h.b16 %v125
    %v199 = vunpack.c.l.b16 %v126
    %v200 = vunpack.c.h.b16 %v126
    %v201 = vunpack.c.l.b16 %v127
    %v202 = vunpack.c.h.b16 %v127
    %v203 = vunpack.c.l.b16 %v128
    %v204 = vunpack.c.h.b16 %v128
    %v205 = vunpack.c.l.b16 %v129
    %v206 = vunpack.c.h.b16 %v129
    %v207 = vunpack.c.l.b16 %v130
    %v208 = vunpack.c.h.b16 %v130
    %v209 = vunpack.c.l.b16 %v131
    %v210 = vunpack.c.h.b16 %v131
    %v211 = vunpack.c.l.b16 %v132
    %v212 = vunpack.c.h.b16 %v132
    %v213 = vunpack.c.l.b16 %v133
    %v214 = vunpack.c.h.b16 %v133
    %v215 = vunpack.c.l.b16 %v134
    %v216 = vunpack.c.h.b16 %v134
    %v217 = vunpack.c.l.b16 %v135
    %v218 = vunpack.c.h.b16 %v135
    %v219 = vunpack.c.l.b16 %v136
    %v220 = vunpack.c.h.b16 %v136
    %v221 = vunpack.c.l.b16 %v137
    %v222 = vunpack.c.h.b16 %v137
    %v223 = vunpack.c.l.b16 %v138
    %v224 = vunpack.c.h.b16 %v138
    %v225 = vunpack.c.l.b16 %v139
    %v226 = vunpack.c.h.b16 %v139
    %v227 = vunpack.c.l.b16 %v140
    %v228 = vunpack.c.h.b16 %v140
    %v229 = vunpack.c.l.b16 %v141
    %v230 = vunpack.c.h.b16 %v141
    %v231 = vunpack.c.l.b16 %v142
    %v232 = vunpack.c.h.b16 %v142
    %v233 = vunpack.c.l.b16 %v143
    %v234 = vunpack.c.h.b16 %v143
    %v235 = vunpack.c.l.b16 %v144
    %v236 = vunpack.c.h.b16 %v144
    %v237 = vunpack.c.l.b16 %v145
    %v238 = vunpack.c.h.b16 %v145
    %v239 = vunpack.c.l.b16 %v146
    %v240 = vunpack.c.h.b16 %v146
    %v241 = vunpack.c.l.b16 %v147
    %v242 = vunpack.c.h.b16 %v147
    %v243 = vunpack.c.l.b16 %v148
    %v244 = vunpack.c.h.b16 %v148
    %v245 = vunpack.c.l.b16 %v149
    %v246 = vunpack.c.h.b16 %v149
    %v247 = vunpack.c.l.b16 %v150
    %v248 = vunpack.c.h.b16 %v150
    %v249 = vunpack.c.l.b16 %v151
    %v250 = vunpack.c.h.b16 %v151
    %v251 = vunpack.c.l.b16 %v152
    %v252 = vunpack.c.h.b16 %v152
    %v253 = vunpack.c.l.b16 %v153
    %v254 = vunpack.c.h.b16 %v153
    %v255 = vunpack.c.l.b16 %v154
    %v256 = vunpack.c.h.b16 %v154
    %v257 = vpack.c.b16 %v195, %v193
    %v258 = vpack.c.b16 %v196, %v194
    %v259 = vpack.c.b16 %v199, %v197
    %v260 = vpack.c.b16 %v200, %v198
    %v261 = vpack.c.b16 %v203, %v201
    %v262 = vpack.c.b16 %v204, %v202
    %v263 = vpack.c.b16 %v207, %v205
    %v264 = vpack.c.b16 %v208, %v206
    %v265 = vpack.c.b16 %v211, %v209
    %v266 = vpack.c.b16 %v212, %v210
    %v267 = vpack.c.b16 %v215, %v213
    %v268 = vpack.c.b16 %v216, %v214
    %v269 = vpack.c.b16 %v219, %v217
    %v270 = vpack.c.b16 %v220, %v218
    %v271 = vpack.c.b16 %v223, %v221
    %v272 = vpack.c.b16 %v224, %v222
    %v273 = vpack.c.b16 %v227, %v225
    %v274 = vpack.c.b16 %v228, %v226
    %v275 = vpack.c.b16 %v231, %v229
    %v276 = vpack.c.b16 %v232, %v230
    %v277 = vpack.c.b16 %v235, %v233
    %v278 = vpack.c.b16 %v236, %v234
    %v279 = vpack.c.b16 %v239, %v237
    %v280 = vpack.c.b16 %v240, %v238
    %v281 = vpack.c.b16 %v243, %v241
    %v282 = vpack.c.b16 %v244, %v242
    %v283 = vpack.c.b16 %v247, %v245
    %v284 = vpack.c.b16 %v248, %v246
    %v285 = vpack.c.b16 %v251, %v249
    %v286 = vpack.c.b16 %v252, %v250
    %v287 = vpack.c.b16 %v255, %v253
    %v288 = vpack.c.b16 %v256, %v254
    %321 = vmatpush.bf16.msra.mxu0 %v271
    %322 = vmatpush.bf16.msra.mxu0 %v269
    %323 = vmatpush.bf16.msra.mxu0 %v267
    %324 = vmatpush.bf16.msra.mxu0 %v265
    %325 = vmatpush.bf16.msra.mxu0 %v263
    %326 = vmatpush.bf16.msra.mxu0 %v261
    %327 = vmatpush.bf16.msra.mxu0 %v259
    %328 = vmatpush.bf16.msra.mxu0 %v257
    %329 = vmatmul.bf16.gmra.mxu0 %v121
    %v330 = vpop.f32.mrf.mxu0
    %v331 = vadd.f32 %v157, %v330
    %v332 = vpop.f32.mrf.mxu0
    %333 = vdwg.mxu0
    %334 = vmatpush.bf16.msra.mxu0 %v287
    %335 = vmatpush.bf16.msra.mxu0 %v285
    %336 = vmatpush.bf16.msra.mxu0 %v283
    %337 = vmatpush.bf16.msra.mxu0 %v281
    %338 = vmatpush.bf16.msra.mxu0 %v279
    %339 = vmatpush.bf16.msra.mxu0 %v277
    %340 = vmatpush.bf16.msra.mxu0 %v275
    %341 = vmatpush.bf16.msra.mxu0 %v273
    %342 = vmatmul.bf16.gmra.mxu0 %v122
    %v343 = vpop.f32.mrf.mxu0
    %v344 = vadd.f32 %v331, %v343
    %v345 = vpop.f32.mrf.mxu0
    %346 = vdwg.mxu0
    %347 = vmatpush.bf16.msra.mxu0 %v272
    %348 = vmatpush.bf16.msra.mxu0 %v270
    %349 = vmatpush.bf16.msra.mxu0 %v268
    %350 = vmatpush.bf16.msra.mxu0 %v266
    %351 = vmatpush.bf16.msra.mxu0 %v264
    %352 = vmatpush.bf16.msra.mxu0 %v262
    %353 = vmatpush.bf16.msra.mxu0 %v260
    %354 = vmatpush.bf16.msra.mxu0 %v258
    %355 = vmatmul.bf16.gmra.mxu0 %v121
    %v356 = vpop.f32.mrf.mxu0
    %v357 = vadd.f32 %v158, %v356
    %v358 = vpop.f32.mrf.mxu0
    %359 = vdwg.mxu0
    %360 = vmatpush.bf16.msra.mxu0 %v288
    %361 = vmatpush.bf16.msra.mxu0 %v286
    %362 = vmatpush.bf16.msra.mxu0 %v284
    %363 = vmatpush.bf16.msra.mxu0 %v282
    %364 = vmatpush.bf16.msra.mxu0 %v280
    %365 = vmatpush.bf16.msra.mxu0 %v278
    %366 = vmatpush.bf16.msra.mxu0 %v276
    %367 = vmatpush.bf16.msra.mxu0 %v274
    %368 = vmatmul.bf16.gmra.mxu0 %v122
    %v369 = vpop.f32.mrf.mxu0
    %v370 = vadd.f32 %v357, %v369
    %v371 = vpop.f32.mrf.mxu0
    %372 = vdwg.mxu0
    %v373 = vpack.c.bf16 %v344, %v344
    %v374 = vpack.c.bf16 %v370, %v370
    %v375 = vunpack.c.l.bf16 %v373
    %v376 = vunpack.c.l.bf16 %v374
    %v377 = vtanh.pop %v375
    %v378 = vtanh.pop %v376
    %v379 = vpack.c.bf16 %v377, %v377
    %v380 = vpack.c.bf16 %v378, %v378
    %v381 = vld [vmem:[#allocation4] sm:$0xf]
    %v382 = vld [vmem:[#allocation4 + $0x4] sm:$0xf]
    %v383 = vld [vmem:[#allocation4 + $0x8] sm:$0xf]
    %v384 = vld [vmem:[#allocation4 + $0xc] sm:$0xf]
    %v385 = vld [vmem:[#allocation4 + $0x10] sm:$0xf]
    %v386 = vld [vmem:[#allocation4 + $0x14] sm:$0xf]
    %v387 = vld [vmem:[#allocation4 + $0x18] sm:$0xf]
    %v388 = vld [vmem:[#allocation4 + $0x1c] sm:$0xf]
    %v389 = vld [vmem:[#allocation4 + $0x20] sm:$0xf]
    %v390 = vld [vmem:[#allocation4 + $0x24] sm:$0xf]
    %v391 = vld [vmem:[#allocation4 + $0x28] sm:$0xf]
    %v392 = vld [vmem:[#allocation4 + $0x2c] sm:$0xf]
    %v393 = vld [vmem:[#allocation4 + $0x30] sm:$0xf]
    %v394 = vld [vmem:[#allocation4 + $0x34] sm:$0xf]
    %v395 = vld [vmem:[#allocation4 + $0x38] sm:$0xf]
    %v396 = vld [vmem:[#allocation4 + $0x3c] sm:$0xf]
    %v397 = vld [vmem:[#allocation4 + $0x40] sm:$0xf]
    %v398 = vld [vmem:[#allocation4 + $0x44] sm:$0xf]
    %v399 = vld [vmem:[#allocation4 + $0x48] sm:$0xf]
    %v400 = vld [vmem:[#allocation4 + $0x4c] sm:$0xf]
    %v401 = vld [vmem:[#allocation4 + $0x50] sm:$0xf]
    %v402 = vld [vmem:[#allocation4 + $0x54] sm:$0xf]
    %v403 = vld [vmem:[#allocation4 + $0x58] sm:$0xf]
    %v404 = vld [vmem:[#allocation4 + $0x5c] sm:$0xf]
    %v405 = vld [vmem:[#allocation4 + $0x60] sm:$0xf]
    %v406 = vld [vmem:[#allocation4 + $0x64] sm:$0xf]
    %v407 = vld [vmem:[#allocation4 + $0x68] sm:$0xf]
    %v408 = vld [vmem:[#allocation4 + $0x6c] sm:$0xf]
    %v409 = vld [vmem:[#allocation4 + $0x70] sm:$0xf]
    %v410 = vld [vmem:[#allocation4 + $0x74] sm:$0xf]
    %v411 = vld [vmem:[#allocation4 + $0x78] sm:$0xf]
    %v412 = vld [vmem:[#allocation4 + $0x7c] sm:$0xf]
    %v413 = vld [vmem:[%s8] sm:$0x1]
    %v415 = vperm.slane %v413, 0
    %v449 = vunpack.c.l.b16 %v381
    %v450 = vunpack.c.l.b16 %v382
    %v451 = vunpack.c.l.b16 %v383
    %v452 = vunpack.c.l.b16 %v384
    %v453 = vunpack.c.l.b16 %v385
    %v454 = vunpack.c.l.b16 %v386
    %v455 = vunpack.c.l.b16 %v387
    %v456 = vunpack.c.l.b16 %v388
    %v457 = vunpack.c.l.b16 %v389
    %v458 = vunpack.c.l.b16 %v390
    %v459 = vunpack.c.l.b16 %v391
    %v460 = vunpack.c.l.b16 %v392
    %v461 = vunpack.c.l.b16 %v393
    %v462 = vunpack.c.l.b16 %v394
    %v463 = vunpack.c.l.b16 %v395
    %v464 = vunpack.c.l.b16 %v396
    %v465 = vunpack.c.l.b16 %v397
    %v466 = vunpack.c.l.b16 %v398
    %v467 = vunpack.c.l.b16 %v399
    %v468 = vunpack.c.l.b16 %v400
    %v469 = vunpack.c.l.b16 %v401
    %v470 = vunpack.c.l.b16 %v402
    %v471 = vunpack.c.l.b16 %v403
    %v472 = vunpack.c.l.b16 %v404
    %v473 = vunpack.c.l.b16 %v405
    %v474 = vunpack.c.l.b16 %v406
    %v475 = vunpack.c.l.b16 %v407
    %v476 = vunpack.c.l.b16 %v408
    %v477 = vunpack.c.l.b16 %v409
    %v478 = vunpack.c.l.b16 %v410
    %v479 = vunpack.c.l.b16 %v411
    %v480 = vunpack.c.l.b16 %v412
    %v481 = vpack.c.b16 %v450, %v449
    %v482 = vpack.c.b16 %v452, %v451
    %v483 = vpack.c.b16 %v454, %v453
    %v484 = vpack.c.b16 %v456, %v455
    %v485 = vpack.c.b16 %v458, %v457
    %v486 = vpack.c.b16 %v460, %v459
    %v487 = vpack.c.b16 %v462, %v461
    %v488 = vpack.c.b16 %v464, %v463
    %v489 = vpack.c.b16 %v466, %v465
    %v490 = vpack.c.b16 %v468, %v467
    %v491 = vpack.c.b16 %v470, %v469
    %v492 = vpack.c.b16 %v472, %v471
    %v493 = vpack.c.b16 %v474, %v473
    %v494 = vpack.c.b16 %v476, %v475
    %v495 = vpack.c.b16 %v478, %v477
    %v496 = vpack.c.b16 %v480, %v479
    %513 = vmatpush.bf16.msra.mxu0 %v488
    %514 = vmatpush.bf16.msra.mxu0 %v487
    %515 = vmatpush.bf16.msra.mxu0 %v486
    %516 = vmatpush.bf16.msra.mxu0 %v485
    %517 = vmatpush.bf16.msra.mxu0 %v484
    %518 = vmatpush.bf16.msra.mxu0 %v483
    %519 = vmatpush.bf16.msra.mxu0 %v482
    %520 = vmatpush.bf16.msra.mxu0 %v481
    %521 = vmatmul.bf16.gmra.mxu0 %v379
    %v522 = vpop.f32.mrf.mxu0
    %v523 = vadd.f32 %v415, %v522
    %v524 = vpop.f32.mrf.mxu0
    %525 = vdwg.mxu0
    %526 = vmatpush.bf16.msra.mxu0 %v496
    %527 = vmatpush.bf16.msra.mxu0 %v495
    %528 = vmatpush.bf16.msra.mxu0 %v494
    %529 = vmatpush.bf16.msra.mxu0 %v493
    %530 = vmatpush.bf16.msra.mxu0 %v492
    %531 = vmatpush.bf16.msra.mxu0 %v491
    %532 = vmatpush.bf16.msra.mxu0 %v490
    %533 = vmatpush.bf16.msra.mxu0 %v489
    %534 = vmatmul.bf16.gmra.mxu0 %v380
    %v535 = vpop.f32.mrf.mxu0
    %v536 = vadd.f32 %v523, %v535
    %v537 = vpop.f32.mrf.mxu0
    %538 = vdwg.mxu0
    %v539 = vtanh.pop %v536
    %v540 = vld [vmem:[%s1] sm:$0xff]
    %v541 = vsub.f32 %v540, %v539
    %v542 = vmul.f32 %v541, %v541
    %v543 = vld [vmem:[%s2] sm:$0x1]
    %v545 = vperm.slane %v543, 0
    %v547 = vmul.f32 %v542, %v545
    %vm548 = vcmask 31744
    %v549 = vsel %vm548, %v547, 0.0
    %550 = vadd.xlane.f32.xlu0 %v549
    %v551 = vpop.xlane.xlu0 %550
    %v552 = vlaneseq
    %v553 = vand.u32 %v552, 127
    %vm554 = vcmp.eq.s32.totalorder %v553, 0
    %vm555 = vcmp.eq.s32.totalorder %v553, 1
    %vm556 = vcmp.eq.s32.totalorder %v553, 2
    %v557 = vmul.f32 %v551, -0.5
    %v558 = vsel %vm556, %v557, 0.0
    %560 = vset.pattern.permute.xlu0 5
    %561 = vperm.xlu0 %560, %v536
    %v562 = vpop.permute.xlu0 %561
    %v564 = vsel %vm555, %v562, %v558
    %565 = vset.pattern.permute.xlu0 4
    %566 = vperm.xlu0 %565, %v536
    %v567 = vpop.permute.xlu0 %566
    %v569 = vsel %vm554, %v567, %v564
    %vm570 = vcmask 64512
    %571 = vst.msk [vmem:[%s9] sm:$0xff] %vm570, %v569
    // Predicated region
    $region46: #{_evaluate_jit.1} parent=1 // pred_check
      _
    $region47: #{_evaluate_jit.1} parent=1 // pred_check_branch
      %573 = sbr.rel (0) target = $region49
    $region48: #{_evaluate_jit.1} parent=1 // pred_region
      _
    $region49: #{_evaluate_jit.1} parent=1 // pred_fallthru
      _
    // Predicated region
    $region50: #{_evaluate_jit.1} parent=1 // pred_check
      _
    $region51: #{_evaluate_jit.1} parent=1 // pred_check_branch
      %575 = sbr.rel (0) target = $region53
    $region52: #{_evaluate_jit.1} parent=1 // pred_region
      _
    $region53: #{_evaluate_jit.1} parent=1 // pred_fallthru
      _
    %576 = vsyncpa [#allocation3], 1
    %577 = vsyncpa [#allocation5], 1

</llo_original>
